<compile_context>
chip_gen: v7x
topology: tpu7x:2x2x1
jax: 0.10.0
libtpu: 0.0.40
codegen_flags: <defaults>
</compile_context>

<pallas_src>
import functools

import jax
import jax.numpy as jnp
from jax.experimental import pallas as pl
from jax.experimental.pallas import tpu as pltpu

LANE = 128
DEFAULT_TILE_ROWS = 4096   # 4096 x 128 f32 = 2 MiB per stream per buffer
NUM_CORES = 2              # megacore split on v7x; harmless extra outer loop on v5e/v6e


def _bce_sum_kernel(x_ref, t_ref, o_ref, *, total_blocks, rem_last):
    c = pl.program_id(0)
    i = pl.program_id(1)
    bpc = pl.num_programs(1)
    g = c * bpc + i                       # global block index (>= total_blocks for phantom blocks)
    tile_rows, lane = x_ref.shape

    @pl.when(i == 0)
    def _():
        o_ref[...] = jnp.zeros_like(o_ref)

    x = x_ref[...].astype(jnp.float32)
    t = t_ref[...].astype(jnp.float32)

    # Fused BCE-with-logits; clipping x to [-100, 100] reproduces PyTorch's
    # binary_cross_entropy clamp of each log term at -100.
    xc = jnp.clip(x, -100.0, 100.0)
    lse = jnp.log1p(jnp.exp(-jnp.abs(xc)))
    loss = jnp.maximum(xc, 0.0) - xc * t + lse

    def fold(v):
        # (tile_rows, lane) -> (8, lane) with pure VPU adds (tile_rows % 8 == 0 guaranteed).
        return v.reshape(tile_rows // 8, 8, lane).sum(axis=0)

    @pl.when(g < total_blocks - 1)
    def _():
        o_ref[0] += fold(loss)

    @pl.when(g == total_blocks - 1)
    def _():
        # Only the globally-last tile can contain padded / out-of-range elements.
        # Tile-local index: no int32 overflow regardless of total element count.
        row_ids = jax.lax.broadcasted_iota(jnp.int32, (tile_rows, lane), 0)
        col_ids = jax.lax.broadcasted_iota(jnp.int32, (tile_rows, lane), 1)
        idx = row_ids * lane + col_ids
        o_ref[0] += fold(jnp.where(idx < rem_last, loss, 0.0))

    # Phantom blocks (g >= total_blocks, only possible when total_blocks % num_cores != 0)
    # fall through both accumulate branches and contribute nothing.


@functools.partial(jax.jit, static_argnames=("use_sigmoid",))
def bce_loss(inputs, target, use_sigmoid: bool = True):
    # The reference module applies sigmoid unconditionally in forward(); useSigmoid is stored
    # but never used, and `smooth` is unused too -- we match that behavior.
    del use_sigmoid

    x = jnp.ravel(inputs)
    t = jnp.ravel(target)
    n = x.shape[0]

    # Large inputs: pad only to LANE granularity (usually a no-op; tail masked in-kernel).
    # Tiny inputs (single partial tile): pad to 8*LANE so the block row count stays a multiple
    # of 8 for the vreg fold -- the copy is negligible at these sizes.
    align = LANE if n >= DEFAULT_TILE_ROWS * LANE else 8 * LANE
    pad = (-n) % align
    if pad:
        x = jnp.pad(x, (0, pad))
        t = jnp.pad(t, (0, pad))
    rows = (n + pad) // LANE

    tile_rows = min(DEFAULT_TILE_ROWS, rows)
    total_blocks = (rows + tile_rows - 1) // tile_rows
    num_cores = NUM_CORES if total_blocks >= NUM_CORES else 1
    bpc = (total_blocks + num_cores - 1) // num_cores          # blocks per core
    rem_last = n - (total_blocks - 1) * tile_rows * LANE       # static Python int, <= tile_rows*LANE

    x2 = x.reshape(rows, LANE)
    t2 = t.reshape(rows, LANE)

    def in_map(c, i):
        # Clamp so phantom blocks (total_blocks % num_cores != 0) re-read the last real block
        # instead of going out of bounds; the kernel skips their accumulation.
        return (jnp.minimum(c * bpc + i, total_blocks - 1), 0)

    tile_spec = pl.BlockSpec((tile_rows, LANE), in_map)

    kernel = functools.partial(_bce_sum_kernel,
                               total_blocks=total_blocks, rem_last=rem_last)

    partials = pl.pallas_call(
        kernel,
        out_shape=jax.ShapeDtypeStruct((num_cores, 8, LANE), jnp.float32),
        grid_spec=pltpu.PrefetchScalarGridSpec(
            num_scalar_prefetch=0,
            grid=(num_cores, bpc),
            in_specs=[tile_spec, tile_spec],
            out_specs=pl.BlockSpec((1, 8, LANE), lambda c, i: (c, 0, 0)),
        ),
        compiler_params=pltpu.CompilerParams(
            dimension_semantics=("parallel", "arbitrary"),
        ),
    )(x2, t2)

    return jnp.sum(partials) / jnp.float32(n)


def _reference_bce(inputs, target):
    # Mirrors PyTorch: sigmoid, then binary_cross_entropy with -100 log clamps, mean reduction.
    p = jax.nn.sigmoid(jnp.ravel(inputs).astype(jnp.float32))
    t = jnp.ravel(target).astype(jnp.float32)
    log_p = jnp.maximum(jnp.log(p), -100.0)
    log_1mp = jnp.maximum(jnp.log(1.0 - p), -100.0)
    return jnp.mean(-(t * log_p + (1.0 - t) * log_1mp))


if __name__ == "__main__":
    key = jax.random.PRNGKey(0)

    def check(shape, k):
        k1, k2 = jax.random.split(k)
        x = jax.random.normal(k1, shape, dtype=jnp.float32)
        tgt = (jax.random.uniform(k2, shape) > 0.5).astype(jnp.float32)
        out = bce_loss(x, tgt)
        jax.block_until_ready(out)
        ref = _reference_bce(x, tgt)
        assert jnp.allclose(out, ref, rtol=1e-4, atol=1e-6), (shape, out, ref)
        return out

    k0, k1, k2 = jax.random.split(key, 3)
    # Primary small segmentation-style case: [batch=2, channels=4, H=16, W=16] (NCHW).
    check((2, 4, 16, 16), k0)
    # Ragged size (n = 1326, not a multiple of 128) exercises the in-kernel tail mask.
    check((2, 3, 17, 13), k1)
    # Multi-block case (rows = 8200 -> 3 blocks over 2 cores, incl. one clamped phantom block).
    check((2, 4, 320, 410), k2)

    print("KERNEL_OK")
</pallas_src>

<mosaic_0001>
module attributes {stable_mosaic.version = 11 : i64} {
  func.func @_bce_sum_kernel(%arg0: i32, %arg1: i32, %arg2: memref<16x128xf32, #tpu.memory_space<vmem>>, %arg3: memref<16x128xf32, #tpu.memory_space<vmem>>, %arg4: memref<1x8x128xf32, #tpu.memory_space<vmem>>) attributes {dimension_semantics = [#tpu.dimension_semantics<parallel>, #tpu.dimension_semantics<arbitrary>], iteration_bounds = array<i64: 1, 1>, scalar_prefetch = 0 : i64, scratch_operands = 0 : i64, tpu.core_type = #tpu.core_type<tc>, window_params = [{transform_indices = @transform_0, window_bounds = array<i64: 16, 128>}, {transform_indices = @transform_1, window_bounds = array<i64: 16, 128>}, {transform_indices = @transform_2, window_bounds = array<i64: 1, 8, 128>}]} {
    %c1_i32 = arith.constant 1 : i32
    %0 = arith.muli %arg0, %c1_i32 : i32
    %1 = arith.addi %0, %arg1 : i32
    %c0_i32 = arith.constant 0 : i32
    %2 = arith.cmpi eq, %arg1, %c0_i32 : i32
    %3 = arith.extui %2 : i1 to i32
    %c0_i32_0 = arith.constant 0 : i32
    %4 = arith.cmpi ne, %3, %c0_i32_0 : i32
    scf.if %4 {
      %cst_11 = arith.constant 0.000000e+00 : f32
      %27 = vector.broadcast %cst_11 : f32 to vector<1x8x128xf32>
      %c0_12 = arith.constant 0 : index
      %c0_13 = arith.constant 0 : index
      %c0_14 = arith.constant 0 : index
      %28 = vector.load %arg4[%c0_12, %c0_13, %c0_14] : memref<1x8x128xf32, #tpu.memory_space<vmem>>, vector<1x8x128xf32>
      tpu.vector_store %arg4[%c0_12, %c0_13, %c0_14], %27 {strides = array<i32>} : memref<1x8x128xf32, #tpu.memory_space<vmem>>, vector<1x8x128xf32>,
    } else {
    }
    %c0 = arith.constant 0 : index
    %c0_1 = arith.constant 0 : index
    %5 = vector.load %arg2[%c0, %c0_1] : memref<16x128xf32, #tpu.memory_space<vmem>>, vector<16x128xf32>
    %c0_2 = arith.constant 0 : index
    %c0_3 = arith.constant 0 : index
    %6 = vector.load %arg3[%c0_2, %c0_3] : memref<16x128xf32, #tpu.memory_space<vmem>>, vector<16x128xf32>
    %cst = arith.constant -1.000000e+02 : f32
    %cst_4 = arith.constant 1.000000e+02 : f32
    %7 = vector.broadcast %cst : f32 to vector<16x128xf32>
    %8 = arith.maximumf %7, %5 : vector<16x128xf32>
    %9 = vector.broadcast %cst_4 : f32 to vector<16x128xf32>
    %10 = arith.minimumf %9, %8 : vector<16x128xf32>
    %11 = math.absf %10 : vector<16x128xf32>
    %cst_5 = arith.constant 0.000000e+00 : f32
    %12 = vector.broadcast %cst_5 : f32 to vector<16x128xf32>
    %13 = arith.subf %12, %11 : vector<16x128xf32>
    %14 = math.exp %13 : vector<16x128xf32>
    %15 = math.log1p %14 : vector<16x128xf32>
    %cst_6 = arith.constant 0.000000e+00 : f32
    %16 = vector.broadcast %cst_6 : f32 to vector<16x128xf32>
    %17 = arith.maximumf %10, %16 : vector<16x128xf32>
    %18 = arith.mulf %10, %6 : vector<16x128xf32>
    %19 = arith.subf %17, %18 : vector<16x128xf32>
    %20 = arith.addf %19, %15 : vector<16x128xf32>
    %c0_i32_7 = arith.constant 0 : i32
    %21 = arith.cmpi slt, %1, %c0_i32_7 : i32
    %22 = arith.extui %21 : i1 to i32
    %c0_i32_8 = arith.constant 0 : i32
    %23 = arith.cmpi ne, %22, %c0_i32_8 : i32
    scf.if %23 {
      %c0_11 = arith.constant 0 : index
      %c0_12 = arith.constant 0 : index
      %c0_13 = arith.constant 0 : index
      %27 = vector.load %arg4[%c0_11, %c0_12, %c0_13] : memref<1x8x128xf32, #tpu.memory_space<vmem>>, vector<1x8x128xf32>
      %28 = vector.shape_cast %27 : vector<1x8x128xf32> to vector<8x128xf32>
      %29 = vector.shape_cast %20 : vector<16x128xf32> to vector<2x8x128xf32>
      %cst_14 = arith.constant dense<0.000000e+00> : vector<8x128xf32>
      %30 = vector.multi_reduction <add>, %29, %cst_14 [0] : vector<2x8x128xf32> to vector<8x128xf32>
      %31 = arith.addf %28, %30 : vector<8x128xf32>
      %c0_15 = arith.constant 0 : index
      %c0_16 = arith.constant 0 : index
      %c0_17 = arith.constant 0 : index
      %32 = vector.load %arg4[%c0_15, %c0_16, %c0_17] : memref<1x8x128xf32, #tpu.memory_space<vmem>>, vector<1x8x128xf32>
      %33 = vector.shape_cast %32 : vector<1x8x128xf32> to vector<8x128xf32>
      %34 = vector.shape_cast %31 : vector<8x128xf32> to vector<1x8x128xf32>
      tpu.vector_store %arg4[%c0_15, %c0_16, %c0_17], %34 {strides = array<i32>} : memref<1x8x128xf32, #tpu.memory_space<vmem>>, vector<1x8x128xf32>,
    } else {
    }
    %c0_i32_9 = arith.constant 0 : i32
    %24 = arith.cmpi eq, %1, %c0_i32_9 : i32
    %25 = arith.extui %24 : i1 to i32
    %c0_i32_10 = arith.constant 0 : i32
    %26 = arith.cmpi ne, %25, %c0_i32_10 : i32
    scf.if %26 {
      %27 = tpu.iota {dimensions = array<i32: 0>} : vector<16x128xi32>
      %28 = tpu.iota {dimensions = array<i32: 1>} : vector<16x128xi32>
      %c128_i32 = arith.constant 128 : i32
      %29 = vector.broadcast %c128_i32 : i32 to vector<16x128xi32>
      %30 = arith.muli %27, %29 : vector<16x128xi32>
      %31 = arith.addi %30, %28 : vector<16x128xi32>
      %c0_11 = arith.constant 0 : index
      %c0_12 = arith.constant 0 : index
      %c0_13 = arith.constant 0 : index
      %32 = vector.load %arg4[%c0_11, %c0_12, %c0_13] : memref<1x8x128xf32, #tpu.memory_space<vmem>>, vector<1x8x128xf32>
      %33 = vector.shape_cast %32 : vector<1x8x128xf32> to vector<8x128xf32>
      %c2048_i32 = arith.constant 2048 : i32
      %34 = vector.broadcast %c2048_i32 : i32 to vector<16x128xi32>
      %35 = arith.cmpi slt, %31, %34 : vector<16x128xi32>
      %cst_14 = arith.constant 0.000000e+00 : f32
      %36 = vector.broadcast %cst_14 : f32 to vector<16x128xf32>
      %37 = arith.select %35, %20, %36 : vector<16x128xi1>, vector<16x128xf32>
      %38 = vector.shape_cast %37 : vector<16x128xf32> to vector<2x8x128xf32>
      %cst_15 = arith.constant dense<0.000000e+00> : vector<8x128xf32>
      %39 = vector.multi_reduction <add>, %38, %cst_15 [0] : vector<2x8x128xf32> to vector<8x128xf32>
      %40 = arith.addf %33, %39 : vector<8x128xf32>
      %c0_16 = arith.constant 0 : index
      %c0_17 = arith.constant 0 : index
      %c0_18 = arith.constant 0 : index
      %41 = vector.load %arg4[%c0_16, %c0_17, %c0_18] : memref<1x8x128xf32, #tpu.memory_space<vmem>>, vector<1x8x128xf32>
      %42 = vector.shape_cast %41 : vector<1x8x128xf32> to vector<8x128xf32>
      %43 = vector.shape_cast %40 : vector<8x128xf32> to vector<1x8x128xf32>
      tpu.vector_store %arg4[%c0_16, %c0_17, %c0_18], %43 {strides = array<i32>} : memref<1x8x128xf32, #tpu.memory_space<vmem>>, vector<1x8x128xf32>,
    } else {
    }
    return
  }
  func.func @transform_0(%arg0: i32, %arg1: i32) -> (i32, i32) {
    %c1_i32 = arith.constant 1 : i32
    %0 = arith.muli %arg0, %c1_i32 : i32
    %1 = arith.addi %0, %arg1 : i32
    %c0_i32 = arith.constant 0 : i32
    %2 = arith.minsi %1, %c0_i32 : i32
    %c0_i32_0 = arith.constant 0 : i32
    %c0_i32_1 = arith.constant 0 : i32
    return %2, %c0_i32_0 : i32, i32
  }
  func.func @transform_1(%arg0: i32, %arg1: i32) -> (i32, i32) {
    %c1_i32 = arith.constant 1 : i32
    %0 = arith.muli %arg0, %c1_i32 : i32
    %1 = arith.addi %0, %arg1 : i32
    %c0_i32 = arith.constant 0 : i32
    %2 = arith.minsi %1, %c0_i32 : i32
    %c0_i32_0 = arith.constant 0 : i32
    %c0_i32_1 = arith.constant 0 : i32
    return %2, %c0_i32_0 : i32, i32
  }
  func.func @transform_2(%arg0: i32, %arg1: i32) -> (i32, i32, i32) {
    %c0_i32 = arith.constant 0 : i32
    %c0_i32_0 = arith.constant 0 : i32
    %c0_i32_1 = arith.constant 0 : i32
    return %arg0, %c0_i32, %c0_i32_0 : i32, i32, i32
  }
}

</mosaic_0001>

<llo_original>
// kernel: bce_loss.1
$region0: #{bce_loss.1}
  #allocation0 [shape = 'u32[]', space=smem, size = 0x4, offset = 0x4, fixed_abs, tag = 'smem constant byte address 0x4 - core index']
  #allocation1 [shape = 'u32[144,128]{1,0:T(1,128)}', space=vmem, size = 0x12000, scoped, tag = 'internal scratch']
  %s0 = inlined_call_operand.vmem [shape: f32[16,128], index: 0, kind: input, shape index: {}]
  %s1 = inlined_call_operand.vmem [shape: f32[16,128], index: 1, kind: input, shape index: {}]
  %s2 = inlined_call_operand.vmem [shape: f32[1,8,128], index: 2, kind: output, shape index: {}]
  %s3 = sld [smem:[#allocation0]]
  $region30: #{bce_loss.1} parent=0
    _
  %s5 = ssub.s32 1, %s3
  %s6 = scalar_select 0, %s5, %s3
  // Predicated region
  $region2: #{bce_loss.1} parent=0 // pred_check
    _
  $region3: #{bce_loss.1} parent=0 // pred_check_branch
    %8 = sbr.rel (0) target = $region5
  $region4: #{bce_loss.1} parent=0 // pred_region
    %s9 = sadd.s32 0, 0
    %p10 = scmp.lt.s32.totalorder %s9, 0
    %s11 = scalar_select %p10, %s9, 0
    %s12 = smul.u32 2, %s11
    %p13 = scmp.lt.s32.totalorder %s12, 1
    %s14 = scalar_select %p13, %s12, 1
    %s15 = smul.addr %s14, 8
    %s16 = scalar_lea.vmem %s0, %s15
    %s17 = sadd.s32 0, 0
    %p18 = scmp.lt.s32.totalorder %s17, 0
    %s19 = scalar_select %p18, %s17, 0
    %s20 = smul.u32 2, %s19
  $region5: #{bce_loss.1} parent=0 // pred_fallthru
    _
  // Predicated region
  $region6: #{bce_loss.1} parent=0 // pred_check
    _
  $region7: #{bce_loss.1} parent=0 // pred_check_branch
    %22 = sbr.rel (0) target = $region9
  $region8: #{bce_loss.1} parent=0 // pred_region
    %s23 = sadd.s32 0, 0
    %p24 = scmp.lt.s32.totalorder %s23, 0
    %s25 = scalar_select %p24, %s23, 0
    %s26 = smul.u32 2, %s25
    %p27 = scmp.lt.s32.totalorder %s26, 1
    %s28 = scalar_select %p27, %s26, 1
    %s29 = smul.addr %s28, 8
    %s30 = scalar_lea.vmem %s1, %s29
    %s31 = sadd.s32 0, 0
    %p32 = scmp.lt.s32.totalorder %s31, 0
    %s33 = scalar_select %p32, %s31, 0
    %s34 = smul.u32 2, %s33
  $region9: #{bce_loss.1} parent=0 // pred_fallthru
    _
  %s35 = sadd.s32 0, 0
  %p36 = scmp.lt.s32.totalorder %s35, 0
  %s37 = scalar_select %p36, %s35, 0
  %s38 = smul.u32 2, %s37
  %p39 = scmp.lt.s32.totalorder %s38, 1
  %s40 = scalar_select %p39, %s38, 1
  %s41 = smul.addr %s40, 8
  %s42 = scalar_lea.vmem %s0, %s41
  %s43 = sadd.s32 0, 0
  %p44 = scmp.lt.s32.totalorder %s43, 0
  %s45 = scalar_select %p44, %s43, 0
  %s46 = smul.u32 2, %s45
  %p47 = scmp.lt.s32.totalorder %s46, 1
  %s48 = scalar_select %p47, %s46, 1
  %s49 = smul.addr %s48, 8
  %s50 = scalar_lea.vmem %s1, %s49
  %s51 = sadd.s32 0, 0
  %p52 = scmp.lt.s32.totalorder %s51, 0
  %s53 = scalar_select %p52, %s51, 0
  %s54 = smul.u32 2, %s53
  %p55 = scmp.lt.s32.totalorder %s54, 1
  %s56 = scalar_select %p55, %s54, 1
  %s57 = smul.addr %s56, 8
  %s58 = scalar_lea.vmem %s0, %s57
  %s59 = sadd.s32 0, 0
  %p60 = scmp.lt.s32.totalorder %s59, 0
  %s61 = scalar_select %p60, %s59, 0
  %s62 = smul.u32 2, %s61
  %s63 = sadd.s32 0, 0
  %p64 = scmp.lt.s32.totalorder %s63, 0
  %s65 = scalar_select %p64, %s63, 0
  %s66 = smul.u32 2, %s65
  %p67 = scmp.lt.s32.totalorder %s66, 1
  %s68 = scalar_select %p67, %s66, 1
  %s69 = smul.addr %s68, 8
  %s70 = scalar_lea.vmem %s1, %s69
  %s71 = sadd.s32 0, 0
  %p72 = scmp.lt.s32.totalorder %s71, 0
  %s73 = scalar_select %p72, %s71, 0
  %s74 = smul.u32 2, %s73
  %s75 = sadd.s32 0, 0
  %p76 = scmp.eq.s32.totalorder 0, 0
  // Predicated region
  $region10: #{bce_loss.1} parent=0 // pred_check
    %p77 = pneg %p76
  $region11: #{bce_loss.1} parent=0 // pred_check_branch
    %79 = sbr.rel (%p77) target = $region13
  $region12: #{bce_loss.1} parent=0 // pred_region
    %80 = vst [vmem:[%s2] sm:$0xff] 0.0
  $region13: #{bce_loss.1} parent=0 // pred_fallthru
    _
  %v81 = vld [vmem:[%s58] sm:$0xff]
  %v82 = vld [vmem:[%s58 + $0x8] sm:$0xff]
  %v83 = vld [vmem:[%s70] sm:$0xff]
  %v84 = vld [vmem:[%s70 + $0x8] sm:$0xff]
  %v85 = vmax.f32 %v81, -100.0
  %v86 = vmax.f32 %v82, -100.0
  %v87 = vmin.f32 %v85, 100.0
  %v88 = vmin.f32 %v86, 100.0
  %v89 = vand.u32 2147483647, %v87
  %v90 = vand.u32 2147483647, %v88
  %v91 = vsub.f32 0.0, %v89
  %v92 = vsub.f32 0.0, %v90
  %v93 = vmul.f32 %v91, 1.442695
  %v94 = vpow.pop %v93
  %v95 = vmul.f32 %v92, 1.442695
  %v96 = vpow.pop %v95
  %v97 = vadd.f32 %v94, 1.0
  %v98 = vlog2.pop %v97
  %v99 = vmul.f32 %v98, 0.6931472
  %v100 = vmul.f32 -0.5, %v94
  %v101 = vadd.f32 %v100, 1.0
  %v102 = vmul.f32 %v101, %v94
  %v103 = vand.u32 2147483647, %v94
  %vm104 = vcmp.lt.f32.partialorder %v103, 0.0004427343
  %v105 = vsel %vm104, %v102, %v99
  %v106 = vadd.f32 %v96, 1.0
  %v107 = vlog2.pop %v106
  %v108 = vmul.f32 %v107, 0.6931472
  %v109 = vmul.f32 -0.5, %v96
  %v110 = vadd.f32 %v109, 1.0
  %v111 = vmul.f32 %v110, %v96
  %v112 = vand.u32 2147483647, %v96
  %vm113 = vcmp.lt.f32.partialorder %v112, 0.0004427343
  %v114 = vsel %vm113, %v111, %v108
  %v115 = vmax.f32 %v87, 0.0
  %v116 = vmax.f32 %v88, 0.0
  %v117 = vmul.f32 %v87, %v83
  %v118 = vmul.f32 %v88, %v84
  %v119 = vsub.f32 %v115, %v117
  %v120 = vsub.f32 %v116, %v118
  %v121 = vadd.f32 %v119, %v105
  %v122 = vadd.f32 %v120, %v114
  %p123 = scmp.lt.s32.totalorder %s75, 0
  // Predicated region
  $region14: #{bce_loss.1} parent=0 // pred_check
    %p124 = pneg %p123
  $region15: #{bce_loss.1} parent=0 // pred_check_branch
    %126 = sbr.rel (%p124) target = $region17
  $region16: #{bce_loss.1} parent=0 // pred_region
    %v127 = vld [vmem:[%s2] sm:$0xff]
    %v128 = vadd.f32 %v121, %v122
    %v129 = vadd.f32 %v127, %v128
    %130 = vst [vmem:[%s2] sm:$0xff] %v129
  $region17: #{bce_loss.1} parent=0 // pred_fallthru
    _
  %p131 = scmp.eq.s32.totalorder %s75, 0
  // Predicated region
  $region18: #{bce_loss.1} parent=0 // pred_check
    %p132 = pneg %p131
  $region19: #{bce_loss.1} parent=0 // pred_check_branch
    %134 = sbr.rel (%p132) target = $region21
  $region20: #{bce_loss.1} parent=0 // pred_region
    %v135 = vlaneseq
    %v136 = vshrl.u32 %v135, 7
    %v137 = vadd.s32 %v136, 8
    %v138 = vlaneseq
    %v139 = vand.u32 %v138, 127
    %v140 = vmul.u32 %v136, 128
    %v141 = vmul.u32 %v137, 128
    %v142 = vadd.s32 %v140, %v139
    %v143 = vadd.s32 %v141, %v139
    %v144 = vld [vmem:[%s2] sm:$0xff]
    %vm145 = vcmp.lt.s32.totalorder %v142, 2048
    %vm146 = vcmp.lt.s32.totalorder %v143, 2048
    %v147 = vsel %vm145, %v121, 0.0
    %v148 = vsel %vm146, %v122, 0.0
    %v149 = vadd.f32 %v147, %v148
    %v150 = vadd.f32 %v144, %v149
    %151 = vst [vmem:[%s2] sm:$0xff] %v150
  $region21: #{bce_loss.1} parent=0 // pred_fallthru
    _
  // Predicated region
  $region22: #{bce_loss.1} parent=0 // pred_check
    _
  $region23: #{bce_loss.1} parent=0 // pred_check_branch
    %153 = sbr.rel (0) target = $region25
  $region24: #{bce_loss.1} parent=0 // pred_region
    _
  $region25: #{bce_loss.1} parent=0 // pred_fallthru
    _
  // Predicated region
  $region26: #{bce_loss.1} parent=0 // pred_check
    _
  $region27: #{bce_loss.1} parent=0 // pred_check_branch
    %155 = sbr.rel (0) target = $region29
  $region28: #{bce_loss.1} parent=0 // pred_region
    _
  $region29: #{bce_loss.1} parent=0 // pred_fallthru
    _

</llo_original>
